<compile_context>
chip_gen: v7x
topology: tpu7x:2x2x1
jax: 0.10.0
libtpu: 0.0.40
codegen_flags: <defaults>
</compile_context>

<pallas_src>
import functools

import jax
import jax.numpy as jnp
from jax import lax
from jax.experimental import pallas as pl
from jax.experimental.pallas import tpu as pltpu


OPEN_BASE_LEN = 42  # matches torch.ones(42) in the module


def _round_up(n, m):
    return ((n + m - 1) // m) * m


def draftnet_kernel(pool_ref, pack_ref, rank_ref, rank_t_ref, arch_ref,
                    open_ref, maxp_ref, out_ref):
    # pool_ref / pack_ref : [tB, Cpad]  bf16
    # rank_ref            : [Cpad, Apad] bf16   (last lane = all-ones column)
    # rank_t_ref          : [Apad, Cpad] bf16   (rows >= n_archs are zero)
    # arch_ref            : [1, Apad]   f32     (lanes >= n_archs are zero)
    # open_ref            : [1, Apad]   f32     (lanes >= 42 are zero)
    # maxp_ref            : [1, 1]      f32     (SMEM scalar)
    # out_ref             : [tB, Cpad]  f32
    pool = pool_ref[...]
    tb = pool.shape[0]
    a_pad = rank_ref.shape[1]

    # --- matmul 1 (MXU, bf16 x bf16 -> f32 acc): simple_pull with the fused
    #     all-ones column in the last lane giving pool.sum(1) for free.
    pull_aug = jnp.dot(pool, rank_ref[...],
                       preferred_element_type=jnp.float32)      # [tB, Apad]

    # --- pick_n = clamp(pool.sum(1), max=41); open_factor = relu(open_base[pick_n])
    #     done as a single full-vreg one-hot select (open_base padded to Apad).
    # NOTE: torch negative-index wraparound is not reproduced; pool counts >= 0.
    pool_sum = pull_aug[:, a_pad - 1:a_pad]                      # [tB, 1]
    idx = jnp.minimum(pool_sum, 41.0).astype(jnp.int32)          # [tB, 1]
    lanes = lax.broadcasted_iota(jnp.int32, (tb, a_pad), 1)
    onehot = lanes == idx                                        # [tB, Apad]
    open_gather = jnp.sum(jnp.where(onehot, open_ref[...], 0.0),
                          axis=1, keepdims=True)                 # [tB, 1]
    open_factor = jnp.maximum(open_gather, 0.0)

    # --- elementwise middle section, kept in f32 (fast path on v5e too).
    #     Padded arch lanes contribute nothing to matmul 2 (their rank_t rows
    #     are zero), so no masking is needed.
    pull_relu = jnp.maximum(pull_aug, 0.0)
    pull_w_open = pull_relu * arch_ref[...] + open_factor
    pull_thresh = jnp.maximum(pull_w_open, 0.0)
    final_pull = jnp.minimum(pull_thresh, maxp_ref[0, 0])        # clamp at max_pull

    # --- matmul 2 against the pre-transposed rank matrix (no in-kernel .T).
    pick = jnp.dot(final_pull.astype(jnp.bfloat16), rank_t_ref[...],
                   preferred_element_type=jnp.float32)           # [tB, Cpad]
    out_ref[...] = jnp.maximum(pick, 0.0) * pack_ref[...].astype(jnp.float32)


@functools.partial(jax.jit, static_argnames=("block_b",))
def draftnet_forward(x, rank_matrix, open_base, arch_bias, max_pull, *,
                     block_b=256):
    x = jnp.asarray(x, jnp.float32)
    rank = jnp.asarray(rank_matrix, jnp.float32)
    b = x.shape[0]
    n_cards, n_archs = rank.shape

    c_pad = _round_up(n_cards, 128)          # lane-dense card axis
    a_pad = _round_up(n_archs + 1, 128)      # +1 for the fused pool-sum column

    # Batch tiling: tile of block_b rows (>=256 feeds the MXU well on v6e/v7x),
    # clamped to the (8-aligned) batch so tiny test batches run in one step.
    b_min = _round_up(b, 8)
    tb = min(_round_up(block_b, 8), b_min)
    b_pad = _round_up(b, tb)

    # ---- wrapper-side layout plumbing (all tiny, one-time per call) ----
    pool = x[:, :n_cards]
    pack = x[:, n_cards:]
    pool_p = jnp.zeros((b_pad, c_pad), jnp.bfloat16).at[:b, :n_cards].set(
        pool.astype(jnp.bfloat16))
    pack_p = jnp.zeros((b_pad, c_pad), jnp.bfloat16).at[:b, :n_cards].set(
        pack.astype(jnp.bfloat16))

    rank_aug = jnp.zeros((c_pad, a_pad), jnp.float32)
    rank_aug = rank_aug.at[:n_cards, :n_archs].set(rank)
    rank_aug = rank_aug.at[:n_cards, a_pad - 1].set(1.0)        # pool-sum column
    rank_aug = rank_aug.astype(jnp.bfloat16)

    rank_t = jnp.zeros((a_pad, c_pad), jnp.float32).at[:n_archs, :n_cards].set(
        rank.T).astype(jnp.bfloat16)

    arch_p = jnp.zeros((1, a_pad), jnp.float32).at[0, :n_archs].set(
        jnp.asarray(arch_bias, jnp.float32))
    open_p = jnp.zeros((1, a_pad), jnp.float32).at[0, :OPEN_BASE_LEN].set(
        jnp.asarray(open_base, jnp.float32))
    maxp = jnp.full((1, 1), max_pull, jnp.float32)

    out = pl.pallas_call(
        draftnet_kernel,
        out_shape=jax.ShapeDtypeStruct((b_pad, c_pad), jnp.float32),
        grid=(b_pad // tb,),
        in_specs=[
            pl.BlockSpec((tb, c_pad), lambda i: (i, 0)),      # pool (bf16)
            pl.BlockSpec((tb, c_pad), lambda i: (i, 0)),      # pack (bf16)
            pl.BlockSpec((c_pad, a_pad), lambda i: (0, 0)),   # rank_aug (bf16)
            pl.BlockSpec((a_pad, c_pad), lambda i: (0, 0)),   # rank_T   (bf16)
            pl.BlockSpec((1, a_pad), lambda i: (0, 0)),       # arch_bias (f32)
            pl.BlockSpec((1, a_pad), lambda i: (0, 0)),       # open_base (f32)
            pl.BlockSpec(memory_space=pltpu.MemorySpace.SMEM),  # max_pull scalar
        ],
        out_specs=pl.BlockSpec((tb, c_pad), lambda i: (i, 0)),
        compiler_params=pltpu.CompilerParams(
            dimension_semantics=("parallel",),    # v7x: shard batch across 2 TCs
            vmem_limit_bytes=32 * 1024 * 1024,    # ample for these tiles on v5e/v6e/v7x
        ),
    )(pool_p, pack_p, rank_aug, rank_t, arch_p, open_p, maxp)

    return out[:b, :n_cards]


def draftnet_reference(x, rank_matrix, open_base, arch_bias, max_pull,
                       matmul_dtype=jnp.float32):
    """Pure-JAX mirror of the PyTorch forward. matmul_dtype=bfloat16 mirrors the
    kernel's mixed precision (bf16 MXU operands, f32 accumulation) exactly."""
    n_cards = rank_matrix.shape[0]
    pool = x[:, :n_cards]
    pack = x[:, n_cards:]

    def mm(a, b):
        return jnp.dot(a.astype(matmul_dtype), b.astype(matmul_dtype),
                       preferred_element_type=jnp.float32)

    pick_n = jnp.minimum(pool.sum(1), 41.0)
    open_factor = jnp.maximum(open_base[pick_n.astype(jnp.int32)], 0.0)
    simple_pull = mm(pool, rank_matrix)
    pull_relu = jnp.maximum(simple_pull, 0.0)
    pull_w_open = pull_relu * arch_bias + open_factor[:, None]
    pull_thresh = jnp.maximum(pull_w_open, 0.0)
    final_pull = jnp.where(pull_thresh > max_pull, max_pull, pull_thresh)
    pick_rankings = mm(final_pull, rank_matrix.T)
    pick_relu = jnp.maximum(pick_rankings, 0.0)
    return pick_relu * pack


if __name__ == "__main__":
    B, N_CARDS, N_ARCHS = 8, 64, 16

    key = jax.random.PRNGKey(0)
    k_rank, k_pool, k_pack = jax.random.split(key, 3)

    # Deterministic parameter init (mirrors DraftNet.__init__ shapes).
    rank_matrix = jax.random.normal(k_rank, (N_CARDS, N_ARCHS), jnp.float32)
    open_base = jnp.ones((OPEN_BASE_LEN,), jnp.float32)
    arch_bias = jnp.ones((N_ARCHS,), jnp.float32)
    max_pull = 5.0

    # pool = nonnegative card counts, pack = binary availability mask.
    pool = jax.random.randint(k_pool, (B, N_CARDS), 0, 2).astype(jnp.float32)
    pack = jax.random.bernoulli(k_pack, 0.3, (B, N_CARDS)).astype(jnp.float32)
    x = jnp.concatenate([pool, pack], axis=1)  # [B, 2*N_CARDS]

    out = draftnet_forward(x, rank_matrix, open_base, arch_bias, max_pull)
    out = jax.block_until_ready(out)
    assert out.shape == (B, N_CARDS)

    # Tight check vs the precision-matched (bf16-operand) reference.
    ref_mixed = draftnet_reference(x, rank_matrix, open_base, arch_bias,
                                   max_pull, matmul_dtype=jnp.bfloat16)
    assert jnp.allclose(out, ref_mixed, atol=5e-2, rtol=1e-2), \
        "mismatch vs precision-matched reference"

    # Informational: drift vs the pure-f32 torch-equivalent forward.
    ref_f32 = draftnet_reference(x, rank_matrix, open_base, arch_bias, max_pull)
    _ = float(jnp.max(jnp.abs(out - ref_f32)))  # bf16-operand drift, not asserted

    print("KERNEL_OK")
</pallas_src>

<mosaic_0001>
module attributes {stable_mosaic.version = 11 : i64} {
  func.func @draftnet_kernel(%arg0: i32, %arg1: memref<8x128xbf16, #tpu.memory_space<vmem>>, %arg2: memref<8x128xbf16, #tpu.memory_space<vmem>>, %arg3: memref<128x128xbf16, #tpu.memory_space<vmem>>, %arg4: memref<128x128xbf16, #tpu.memory_space<vmem>>, %arg5: memref<1x128xf32, #tpu.memory_space<vmem>>, %arg6: memref<1x128xf32, #tpu.memory_space<vmem>>, %arg7: memref<1x1xf32, #tpu.memory_space<smem>>, %arg8: memref<8x128xf32, #tpu.memory_space<vmem>>) attributes {dimension_semantics = [#tpu.dimension_semantics<parallel>], iteration_bounds = array<i64: 1>, scalar_prefetch = 0 : i64, scratch_operands = 0 : i64, tpu.core_type = #tpu.core_type<tc>, window_params = [{transform_indices = @transform_0, window_bounds = array<i64: 8, 128>}, {transform_indices = @transform_1, window_bounds = array<i64: 8, 128>}, {pipeline_mode = #tpu.pipeline_mode<synchronous>, transform_indices = @transform_2, window_bounds = array<i64: 128, 128>}, {pipeline_mode = #tpu.pipeline_mode<synchronous>, transform_indices = @transform_3, window_bounds = array<i64: 128, 128>}, {pipeline_mode = #tpu.pipeline_mode<synchronous>, transform_indices = @transform_4, window_bounds = array<i64: 1, 128>}, {pipeline_mode = #tpu.pipeline_mode<synchronous>, transform_indices = @transform_5, window_bounds = array<i64: 1, 128>}, {transform_indices = @transform_6, window_bounds = array<i64: 1, 1>}, {transform_indices = @transform_7, window_bounds = array<i64: 8, 128>}]} {
    %c0 = arith.constant 0 : index
    %c0_0 = arith.constant 0 : index
    %0 = vector.load %arg1[%c0, %c0_0] : memref<8x128xbf16, #tpu.memory_space<vmem>>, vector<8x128xbf16>
    %c0_1 = arith.constant 0 : index
    %c0_2 = arith.constant 0 : index
    %1 = vector.load %arg3[%c0_1, %c0_2] : memref<128x128xbf16, #tpu.memory_space<vmem>>, vector<128x128xbf16>
    %cst = arith.constant dense<0.000000e+00> : vector<8x128xf32>
    %2 = tpu.matmul %0, %1, %cst {dimension_numbers = #tpu.dot_dimension_numbers<[1], [0], [0], [1], [0, 0, 1, 1], [], []>} : vector<8x128xbf16>, vector<128x128xbf16>, vector<8x128xf32> -> vector<8x128xf32>
    %3 = vector.extract_strided_slice %2 {offsets = [0, 127], sizes = [8, 1], strides = [1, 1]} : vector<8x128xf32> to vector<8x1xf32>
    %cst_3 = arith.constant 4.100000e+01 : f32
    %4 = vector.broadcast %cst_3 : f32 to vector<8x1xf32>
    %5 = arith.minimumf %3, %4 : vector<8x1xf32>
    %6 = arith.fptosi %5 : vector<8x1xf32> to vector<8x1xi32>
    %7 = tpu.iota {dimensions = array<i32: 1>} : vector<8x128xi32>
    %8 = vector.broadcast %6 : vector<8x1xi32> to vector<8x128xi32>
    %9 = arith.cmpi eq, %7, %8 : vector<8x128xi32>
    %c0_4 = arith.constant 0 : index
    %c0_5 = arith.constant 0 : index
    %10 = vector.load %arg6[%c0_4, %c0_5] : memref<1x128xf32, #tpu.memory_space<vmem>>, vector<1x128xf32>
    %cst_6 = arith.constant 0.000000e+00 : f32
    %11 = vector.shape_cast %10 : vector<1x128xf32> to vector<1x128xf32>
    %12 = vector.broadcast %11 : vector<1x128xf32> to vector<8x128xf32>
    %13 = vector.broadcast %cst_6 : f32 to vector<8x128xf32>
    %14 = arith.select %9, %12, %13 : vector<8x128xi1>, vector<8x128xf32>
    %cst_7 = arith.constant dense<0.000000e+00> : vector<8xf32>
    %15 = vector.multi_reduction <add>, %14, %cst_7 [1] : vector<8x128xf32> to vector<8xf32>
    %16 = vector.shape_cast %15 : vector<8xf32> to vector<8x1xf32>
    %cst_8 = arith.constant 0.000000e+00 : f32
    %17 = vector.broadcast %cst_8 : f32 to vector<8x1xf32>
    %18 = arith.maximumf %16, %17 : vector<8x1xf32>
    %cst_9 = arith.constant 0.000000e+00 : f32
    %19 = vector.broadcast %cst_9 : f32 to vector<8x128xf32>
    %20 = arith.maximumf %2, %19 : vector<8x128xf32>
    %c0_10 = arith.constant 0 : index
    %c0_11 = arith.constant 0 : index
    %21 = vector.load %arg5[%c0_10, %c0_11] : memref<1x128xf32, #tpu.memory_space<vmem>>, vector<1x128xf32>
    %22 = vector.broadcast %21 : vector<1x128xf32> to vector<8x128xf32>
    %23 = arith.mulf %20, %22 : vector<8x128xf32>
    %24 = vector.broadcast %18 : vector<8x1xf32> to vector<8x128xf32>
    %25 = arith.addf %23, %24 : vector<8x128xf32>
    %cst_12 = arith.constant 0.000000e+00 : f32
    %26 = vector.broadcast %cst_12 : f32 to vector<8x128xf32>
    %27 = arith.maximumf %25, %26 : vector<8x128xf32>
    %c0_13 = arith.constant 0 : index
    %c0_14 = arith.constant 0 : index
    %28 = memref.load %arg7[%c0_13, %c0_14] : memref<1x1xf32, #tpu.memory_space<smem>>
    %29 = vector.broadcast %28 : f32 to vector<8x128xf32>
    %30 = arith.minimumf %27, %29 : vector<8x128xf32>
    %31 = arith.truncf %30 : vector<8x128xf32> to vector<8x128xbf16>
    %c0_15 = arith.constant 0 : index
    %c0_16 = arith.constant 0 : index
    %32 = vector.load %arg4[%c0_15, %c0_16] : memref<128x128xbf16, #tpu.memory_space<vmem>>, vector<128x128xbf16>
    %cst_17 = arith.constant dense<0.000000e+00> : vector<8x128xf32>
    %33 = tpu.matmul %31, %32, %cst_17 {dimension_numbers = #tpu.dot_dimension_numbers<[1], [0], [0], [1], [0, 0, 1, 1], [], []>} : vector<8x128xbf16>, vector<128x128xbf16>, vector<8x128xf32> -> vector<8x128xf32>
    %cst_18 = arith.constant 0.000000e+00 : f32
    %34 = vector.broadcast %cst_18 : f32 to vector<8x128xf32>
    %35 = arith.maximumf %33, %34 : vector<8x128xf32>
    %c0_19 = arith.constant 0 : index
    %c0_20 = arith.constant 0 : index
    %36 = vector.load %arg2[%c0_19, %c0_20] : memref<8x128xbf16, #tpu.memory_space<vmem>>, vector<8x128xbf16>
    %37 = arith.extf %36 : vector<8x128xbf16> to vector<8x128xf32>
    %38 = arith.mulf %35, %37 : vector<8x128xf32>
    %c0_21 = arith.constant 0 : index
    %c0_22 = arith.constant 0 : index
    %39 = vector.load %arg8[%c0_21, %c0_22] : memref<8x128xf32, #tpu.memory_space<vmem>>, vector<8x128xf32>
    tpu.vector_store %arg8[%c0_21, %c0_22], %38 {strides = array<i32>} : memref<8x128xf32, #tpu.memory_space<vmem>>, vector<8x128xf32>,
    return
  }
  func.func @transform_0(%arg0: i32) -> (i32, i32) {
    %c0_i32 = arith.constant 0 : i32
    %c0_i32_0 = arith.constant 0 : i32
    return %arg0, %c0_i32 : i32, i32
  }
  func.func @transform_1(%arg0: i32) -> (i32, i32) {
    %c0_i32 = arith.constant 0 : i32
    %c0_i32_0 = arith.constant 0 : i32
    return %arg0, %c0_i32 : i32, i32
  }
  func.func @transform_2(%arg0: i32) -> (i32, i32) {
    %c0_i32 = arith.constant 0 : i32
    %c0_i32_0 = arith.constant 0 : i32
    %c0_i32_1 = arith.constant 0 : i32
    return %c0_i32, %c0_i32_0 : i32, i32
  }
  func.func @transform_3(%arg0: i32) -> (i32, i32) {
    %c0_i32 = arith.constant 0 : i32
    %c0_i32_0 = arith.constant 0 : i32
    %c0_i32_1 = arith.constant 0 : i32
    return %c0_i32, %c0_i32_0 : i32, i32
  }
  func.func @transform_4(%arg0: i32) -> (i32, i32) {
    %c0_i32 = arith.constant 0 : i32
    %c0_i32_0 = arith.constant 0 : i32
    %c0_i32_1 = arith.constant 0 : i32
    return %c0_i32, %c0_i32_0 : i32, i32
  }
  func.func @transform_5(%arg0: i32) -> (i32, i32) {
    %c0_i32 = arith.constant 0 : i32
    %c0_i32_0 = arith.constant 0 : i32
    %c0_i32_1 = arith.constant 0 : i32
    return %c0_i32, %c0_i32_0 : i32, i32
  }
  func.func @transform_6(%arg0: i32) -> (i32, i32) {
    %c0_i32 = arith.constant 0 : i32
    %c0_i32_0 = arith.constant 0 : i32
    %c0_i32_1 = arith.constant 0 : i32
    return %c0_i32, %c0_i32_0 : i32, i32
  }
  func.func @transform_7(%arg0: i32) -> (i32, i32) {
    %c0_i32 = arith.constant 0 : i32
    %c0_i32_0 = arith.constant 0 : i32
    return %arg0, %c0_i32 : i32, i32
  }
}

</mosaic_0001>

<llo_original>
// kernel: draftnet_forward.1
$region0: #{draftnet_forward.1}
  #allocation0 [shape = 'u32[]', space=smem, size = 0x4, offset = 0x4, fixed_abs, tag = 'smem constant byte address 0x4 - core index']
  #allocation1 [shape = 'u32[144,128]{1,0:T(1,128)}', space=vmem, size = 0x12000, scoped, tag = 'internal scratch']
  #allocation2 [shape = 'f32[1,1]{1,0:T(1,128)S(6)}', space=smem, size = 0x200, scoped, tag = 'scoped memory for draftnet_forward.1']
  %s0 = inlined_call_operand.vmem [shape: bf16[8,128], index: 0, kind: input, shape index: {}]
  %s1 = inlined_call_operand.vmem [shape: bf16[8,128], index: 1, kind: input, shape index: {}]
  %s2 = inlined_call_operand.vmem [shape: bf16[128,128], index: 2, kind: input, shape index: {}]
  %s3 = inlined_call_operand.vmem [shape: bf16[128,128], index: 3, kind: input, shape index: {}]
  %s4 = inlined_call_operand.vmem [shape: f32[1,128], index: 4, kind: input, shape index: {}]
  %s5 = inlined_call_operand.vmem [shape: f32[1,128], index: 5, kind: input, shape index: {}]
  %s6 = inlined_call_operand.<no memory space> [shape: f32[1,1], index: 6, kind: input, shape index: {}]
  %s7 = inlined_call_operand.hbm [shape: f32[8,128], index: 7, kind: output, shape index: {}]
  %s8 = sld [smem:[#allocation0]]
  $region38: #{draftnet_forward.1} parent=0
    _
  %s10 = ssub.s32 1, %s8
  %s11 = scalar_select 0, %s10, %s8
  %12 = sst [smem:[#allocation2]] %s6
  $region1: #{draftnet_forward.1} parent=0
    #allocation3 [shape = 'u8[4096]{0}', space=vmem, size = 0x1000, scoped, tag = 'output window, operand 0, single buffered']
    #allocation4 [shape = 's32[1]{0}', space=sflag, size = 0x4, scoped, tag = 'scoped memory for draftnet_forward.1']
    %13 = vsyncpa [#allocation4], 0
    // Predicated region
    $region2: #{draftnet_forward.1} parent=1 // pred_check
      _
    $region3: #{draftnet_forward.1} parent=1 // pred_check_branch
      %15 = sbr.rel (0) target = $region5
    $region4: #{draftnet_forward.1} parent=1 // pred_region
      _
    $region5: #{draftnet_forward.1} parent=1 // pred_fallthru
      _
    // Predicated region
    $region6: #{draftnet_forward.1} parent=1 // pred_check
      _
    $region7: #{draftnet_forward.1} parent=1 // pred_check_branch
      %17 = sbr.rel (0) target = $region9
    $region8: #{draftnet_forward.1} parent=1 // pred_region
      _
    $region9: #{draftnet_forward.1} parent=1 // pred_fallthru
      _
    // Predicated region
    $region10: #{draftnet_forward.1} parent=1 // pred_check
      _
    $region11: #{draftnet_forward.1} parent=1 // pred_check_branch
      %19 = sbr.rel (0) target = $region13
    $region12: #{draftnet_forward.1} parent=1 // pred_region
      _
    $region13: #{draftnet_forward.1} parent=1 // pred_fallthru
      _
    // Predicated region
    $region14: #{draftnet_forward.1} parent=1 // pred_check
      _
    $region15: #{draftnet_forward.1} parent=1 // pred_check_branch
      %21 = sbr.rel (0) target = $region17
    $region16: #{draftnet_forward.1} parent=1 // pred_region
      _
    $region17: #{draftnet_forward.1} parent=1 // pred_fallthru
      _
    // Predicated region
    $region18: #{draftnet_forward.1} parent=1 // pred_check
      _
    $region19: #{draftnet_forward.1} parent=1 // pred_check_branch
      %23 = sbr.rel (0) target = $region21
    $region20: #{draftnet_forward.1} parent=1 // pred_region
      _
    $region21: #{draftnet_forward.1} parent=1 // pred_fallthru
      _
    // Predicated region
    $region22: #{draftnet_forward.1} parent=1 // pred_check
      _
    $region23: #{draftnet_forward.1} parent=1 // pred_check_branch
      %25 = sbr.rel (0) target = $region25
    $region24: #{draftnet_forward.1} parent=1 // pred_region
      _
    $region25: #{draftnet_forward.1} parent=1 // pred_fallthru
      _
    // Predicated region
    $region26: #{draftnet_forward.1} parent=1 // pred_check
      _
    $region27: #{draftnet_forward.1} parent=1 // pred_check_branch
      %27 = sbr.rel (0) target = $region29
    $region28: #{draftnet_forward.1} parent=1 // pred_region
      _
    $region29: #{draftnet_forward.1} parent=1 // pred_fallthru
      _
    %v29 = vld [vmem:[%s0] sm:$0xf]
    %v30 = vld [vmem:[%s2] sm:$0xf]
    %v31 = vld [vmem:[%s2 + $0x4] sm:$0xf]
    %v32 = vld [vmem:[%s2 + $0x8] sm:$0xf]
    %v33 = vld [vmem:[%s2 + $0xc] sm:$0xf]
    %v34 = vld [vmem:[%s2 + $0x10] sm:$0xf]
    %v35 = vld [vmem:[%s2 + $0x14] sm:$0xf]
    %v36 = vld [vmem:[%s2 + $0x18] sm:$0xf]
    %v37 = vld [vmem:[%s2 + $0x1c] sm:$0xf]
    %v38 = vld [vmem:[%s2 + $0x20] sm:$0xf]
    %v39 = vld [vmem:[%s2 + $0x24] sm:$0xf]
    %v40 = vld [vmem:[%s2 + $0x28] sm:$0xf]
    %v41 = vld [vmem:[%s2 + $0x2c] sm:$0xf]
    %v42 = vld [vmem:[%s2 + $0x30] sm:$0xf]
    %v43 = vld [vmem:[%s2 + $0x34] sm:$0xf]
    %v44 = vld [vmem:[%s2 + $0x38] sm:$0xf]
    %v45 = vld [vmem:[%s2 + $0x3c] sm:$0xf]
    %v62 = vunpack.c.l.b16 %v30
    %v63 = vunpack.c.l.b16 %v31
    %v64 = vunpack.c.l.b16 %v32
    %v65 = vunpack.c.l.b16 %v33
    %v66 = vunpack.c.l.b16 %v34
    %v67 = vunpack.c.l.b16 %v35
    %v68 = vunpack.c.l.b16 %v36
    %v69 = vunpack.c.l.b16 %v37
    %v70 = vunpack.c.l.b16 %v38
    %v71 = vunpack.c.l.b16 %v39
    %v72 = vunpack.c.l.b16 %v40
    %v73 = vunpack.c.l.b16 %v41
    %v74 = vunpack.c.l.b16 %v42
    %v75 = vunpack.c.l.b16 %v43
    %v76 = vunpack.c.l.b16 %v44
    %v77 = vunpack.c.l.b16 %v45
    %v78 = vpack.c.b16 %v63, %v62
    %v79 = vpack.c.b16 %v65, %v64
    %v80 = vpack.c.b16 %v67, %v66
    %v81 = vpack.c.b16 %v69, %v68
    %v82 = vpack.c.b16 %v71, %v70
    %v83 = vpack.c.b16 %v73, %v72
    %v84 = vpack.c.b16 %v75, %v74
    %v85 = vpack.c.b16 %v77, %v76
    %94 = vmatprep.subr.bf16.mxu0 0
    %95 = vmatpush1.bf16.msra.mxu0 %v78
    %96 = vmatprep.subr.bf16.mxu0 0
    %97 = vmatpush1.bf16.msra.mxu0 %v79
    %98 = vmatprep.subr.bf16.mxu0 0
    %99 = vmatpush1.bf16.msra.mxu0 %v80
    %100 = vmatprep.subr.bf16.mxu0 0
    %101 = vmatpush1.bf16.msra.mxu0 %v81
    %102 = vmatprep.subr.bf16.mxu0 0
    %103 = vmatpush1.bf16.msra.mxu0 %v82
    %104 = vmatprep.subr.bf16.mxu0 0
    %105 = vmatpush1.bf16.msra.mxu0 %v83
    %106 = vmatprep.subr.bf16.mxu0 0
    %107 = vmatpush1.bf16.msra.mxu0 %v84
    %108 = vmatprep.subr.bf16.mxu0 0
    %109 = vmatpush1.bf16.msra.mxu0 %v85
    %110 = vmatprep.subr.bf16.mxu0 0
    %111 = vmatpush1.bf16.msra.mxu0 0
    %112 = vmatprep.subr.bf16.mxu0 0
    %113 = vmatpush1.bf16.msra.mxu0 0
    %114 = vmatprep.subr.bf16.mxu0 0
    %115 = vmatpush1.bf16.msra.mxu0 0
    %116 = vmatprep.subr.bf16.mxu0 0
    %117 = vmatpush1.bf16.msra.mxu0 0
    %118 = vmatprep.subr.bf16.mxu0 0
    %119 = vmatpush1.bf16.msra.mxu0 0
    %120 = vmatprep.subr.bf16.mxu0 0
    %121 = vmatpush1.bf16.msra.mxu0 0
    %122 = vmatprep.subr.bf16.mxu0 0
    %123 = vmatpush1.bf16.msra.mxu0 0
    %124 = vmatprep.subr.bf16.mxu0 0
    %125 = vmatpush1.bf16.msra.mxu0 0
    %126 = vmatprep.mubr.bf16.mxu0 0
    %127 = vmatmul.mubr.bf16.gmra.mrb[0].mxu0 %v29
    %v128 = vpop.f32.mrb[0].mxu0
    %v129 = vadd.f32 0.0, %v128
    %v130 = vpop.f32.mrb[0].mxu0
    %v131 = vpop.f32.mrb[0].mxu0
    %v132 = vpop.f32.mrb[0].mxu0
    %133 = vdwg.mxu0
    %v134 = vmin.f32 %v129, 41.0
    %v135 = vcvt.f32.s32.to.zero.pseudo %v134
    %v136 = vlaneseq
    %v137 = vand.u32 %v136, 127
    %138 = vset.pattern.permute.xlu0 127
    %139 = vperm.xlu0 %138, %v135
    %v140 = vpop.permute.xlu0 %139
    %vm141 = vcmp.eq.s32.totalorder %v137, %v140
    %v142 = vld [vmem:[%s5] sm:$0x1]
    %v144 = vlaneseq
    %v145 = vshrl.u32 %v144, 7
    %v146 = vsub.s32 0, %v145
    %v147 = vrot.slane %v142, %v146
    %v149 = vsel %vm141, %v147, 0.0
    %150 = vadd.xlane.f32.xlu0 %v149
    %v151 = vpop.xlane.xlu0 %150
    %v152 = vmax.f32 %v151, 0.0
    %v153 = vmax.f32 %v129, 0.0
    %v154 = vld [vmem:[%s4] sm:$0x1]
    %v156 = vlaneseq
    %v157 = vshrl.u32 %v156, 7
    %v158 = vsub.s32 0, %v157
    %v159 = vrot.slane %v154, %v158
    %v161 = vmul.f32 %v153, %v159
    %v162 = vadd.f32 %v161, %v152
    %v163 = vmax.f32 %v162, 0.0
    %s164 = sld [smem:[#allocation2]]
    %v165 = vstv %s164
    %v166 = vmin.f32 %v163, %v165
    %v167 = vpack.c.bf16 %v166, %v166
    %v168 = vld [vmem:[%s3] sm:$0xf]
    %v169 = vld [vmem:[%s3 + $0x4] sm:$0xf]
    %v170 = vld [vmem:[%s3 + $0x8] sm:$0xf]
    %v171 = vld [vmem:[%s3 + $0xc] sm:$0xf]
    %v172 = vld [vmem:[%s3 + $0x10] sm:$0xf]
    %v173 = vld [vmem:[%s3 + $0x14] sm:$0xf]
    %v174 = vld [vmem:[%s3 + $0x18] sm:$0xf]
    %v175 = vld [vmem:[%s3 + $0x1c] sm:$0xf]
    %v176 = vld [vmem:[%s3 + $0x20] sm:$0xf]
    %v177 = vld [vmem:[%s3 + $0x24] sm:$0xf]
    %v178 = vld [vmem:[%s3 + $0x28] sm:$0xf]
    %v179 = vld [vmem:[%s3 + $0x2c] sm:$0xf]
    %v180 = vld [vmem:[%s3 + $0x30] sm:$0xf]
    %v181 = vld [vmem:[%s3 + $0x34] sm:$0xf]
    %v182 = vld [vmem:[%s3 + $0x38] sm:$0xf]
    %v183 = vld [vmem:[%s3 + $0x3c] sm:$0xf]
    %v200 = vunpack.c.l.b16 %v168
    %v201 = vunpack.c.l.b16 %v169
    %v202 = vunpack.c.l.b16 %v170
    %v203 = vunpack.c.l.b16 %v171
    %v204 = vunpack.c.l.b16 %v172
    %v205 = vunpack.c.l.b16 %v173
    %v206 = vunpack.c.l.b16 %v174
    %v207 = vunpack.c.l.b16 %v175
    %v208 = vunpack.c.l.b16 %v176
    %v209 = vunpack.c.l.b16 %v177
    %v210 = vunpack.c.l.b16 %v178
    %v211 = vunpack.c.l.b16 %v179
    %v212 = vunpack.c.l.b16 %v180
    %v213 = vunpack.c.l.b16 %v181
    %v214 = vunpack.c.l.b16 %v182
    %v215 = vunpack.c.l.b16 %v183
    %v216 = vpack.c.b16 %v201, %v200
    %v217 = vpack.c.b16 %v203, %v202
    %v218 = vpack.c.b16 %v205, %v204
    %v219 = vpack.c.b16 %v207, %v206
    %v220 = vpack.c.b16 %v209, %v208
    %v221 = vpack.c.b16 %v211, %v210
    %v222 = vpack.c.b16 %v213, %v212
    %v223 = vpack.c.b16 %v215, %v214
    %232 = vmatprep.subr.bf16.mxu0 0
    %233 = vmatpush1.bf16.msra.mxu0 %v216
    %234 = vmatprep.subr.bf16.mxu0 0
    %235 = vmatpush1.bf16.msra.mxu0 %v217
    %236 = vmatprep.subr.bf16.mxu0 0
    %237 = vmatpush1.bf16.msra.mxu0 %v218
    %238 = vmatprep.subr.bf16.mxu0 0
    %239 = vmatpush1.bf16.msra.mxu0 %v219
    %240 = vmatprep.subr.bf16.mxu0 0
    %241 = vmatpush1.bf16.msra.mxu0 %v220
    %242 = vmatprep.subr.bf16.mxu0 0
    %243 = vmatpush1.bf16.msra.mxu0 %v221
    %244 = vmatprep.subr.bf16.mxu0 0
    %245 = vmatpush1.bf16.msra.mxu0 %v222
    %246 = vmatprep.subr.bf16.mxu0 0
    %247 = vmatpush1.bf16.msra.mxu0 %v223
    %248 = vmatprep.subr.bf16.mxu0 0
    %249 = vmatpush1.bf16.msra.mxu0 0
    %250 = vmatprep.subr.bf16.mxu0 0
    %251 = vmatpush1.bf16.msra.mxu0 0
    %252 = vmatprep.subr.bf16.mxu0 0
    %253 = vmatpush1.bf16.msra.mxu0 0
    %254 = vmatprep.subr.bf16.mxu0 0
    %255 = vmatpush1.bf16.msra.mxu0 0
    %256 = vmatprep.subr.bf16.mxu0 0
    %257 = vmatpush1.bf16.msra.mxu0 0
    %258 = vmatprep.subr.bf16.mxu0 0
    %259 = vmatpush1.bf16.msra.mxu0 0
    %260 = vmatprep.subr.bf16.mxu0 0
    %261 = vmatpush1.bf16.msra.mxu0 0
    %262 = vmatprep.subr.bf16.mxu0 0
    %263 = vmatpush1.bf16.msra.mxu0 0
    %264 = vmatprep.mubr.bf16.mxu0 0
    %265 = vmatmul.mubr.bf16.gmra.mrb[0].mxu0 %v167
    %v266 = vpop.f32.mrb[0].mxu0
    %v267 = vadd.f32 0.0, %v266
    %v268 = vpop.f32.mrb[0].mxu0
    %v269 = vpop.f32.mrb[0].mxu0
    %v270 = vpop.f32.mrb[0].mxu0
    %271 = vdwg.mxu0
    %v272 = vmax.f32 %v267, 0.0
    %v273 = vld [vmem:[%s1] sm:$0xf]
    %v274 = vunpack.c.l.bf16 %v273
    %v275 = vmul.f32 %v272, %v274
    %276 = vst [vmem:[#allocation3] sm:$0xff] %v275
    // Predicated region
    $region30: #{draftnet_forward.1} parent=1 // pred_check
      _
    $region31: #{draftnet_forward.1} parent=1 // pred_check_branch
      %278 = sbr.rel (0) target = $region33
    $region32: #{draftnet_forward.1} parent=1 // pred_region
      %s280 = ssub.s32 128, 128
      %281 = vsyncadd [#allocation4], %s280
      %s283 = sshll.u32 [#allocation3], 4
      %s284 = int_to_ptr.vmem [resolvable:$true] %s283
      %286 = dma.vmem_to_hbm [thread:$0]  %s284, 128, %s7, [#allocation4]
    $region33: #{draftnet_forward.1} parent=1 // pred_fallthru
      _
    // Predicated region
    $region34: #{draftnet_forward.1} parent=1 // pred_check
      _
    $region35: #{draftnet_forward.1} parent=1 // pred_check_branch
      %288 = sbr.rel (0) target = $region37
    $region36: #{draftnet_forward.1} parent=1 // pred_region
      %289 = dma.done [#allocation4], 128
    $region37: #{draftnet_forward.1} parent=1 // pred_fallthru
      _
    %290 = vsyncpa [#allocation4], 1

</llo_original>
